<compile_context>
chip_gen: v5e
topology: v5e:2x2
jax: 0.10.0
libtpu: 0.0.40
codegen_flags: <defaults>
</compile_context>

<pallas_src>
import functools

import jax
import jax.numpy as jnp
from jax.experimental import pallas as pl
from jax.experimental.pallas import tpu as pltpu


def _round_up(x, m):
    return (x + m - 1) // m * m


_LANE = 128                       # class dim padded to a multiple of the lane width
_VMEM_BUDGET = 20 * 1024 * 1024   # tile-picking budget (leaves compiler headroom)
_VMEM_LIMIT = 32 * 1024 * 1024    # explicit scoped-VMEM limit handed to Mosaic


# ---------------------------------------------------------------------------
# Pallas kernel: fused projection + argmax + masked cross-entropy per row.
# Grid = (cdiv(M, tm),); each step handles a (tm, .) row tile.
# ---------------------------------------------------------------------------
def _inference_kernel(x_ref, w_ref, b_ref, tgt_ref, msk_ref,
                      logits_ref, row_ref, *, n_rows, n_classes):
    tm = x_ref.shape[0]
    cp = w_ref.shape[1]

    # (tm, D) bf16 @ (D, Cp) bf16 -> f32 accumulation on the MXU, f32 bias add.
    logits = jnp.dot(x_ref[...].astype(jnp.bfloat16), w_ref[...],
                     preferred_element_type=jnp.float32) + b_ref[...]
    # bf16 writeback halves the dominant HBM write; loss stays f32 below.
    logits_ref[...] = logits.astype(logits_ref.dtype)

    lane = jax.lax.broadcasted_iota(jnp.int32, logits.shape, 1)     # (tm, Cp)
    col_ok = lane < n_classes                                       # real classes
    z = jnp.where(col_ok, logits, jnp.float32(-1e30))

    # argmax over real classes (first max index, matches torch.max ties).
    mx = jnp.max(z, axis=-1, keepdims=True)                         # (tm, 1)
    tags = jnp.min(jnp.where(z == mx, lane, cp), axis=-1, keepdims=True)

    # nll = logsumexp(z) - logits[target].  exp/log kept in f32 (kernel is
    # HBM-bound; bf16 EUP would only help v6e/v7x and is hidden anyway).
    lse = mx + jnp.log(jnp.sum(jnp.exp(z - mx), axis=-1, keepdims=True))
    tgt_logit = jnp.sum(jnp.where(lane == tgt_ref[...], logits, 0.0),
                        axis=-1, keepdims=True)                     # (tm, 1)

    # Tail tile: rows >= n_rows hold stale VMEM data -> select them to 0
    # (a multiply would propagate NaN/Inf from garbage rows).
    row = (pl.program_id(0) * tm
           + jax.lax.broadcasted_iota(jnp.int32, (tm, 1), 0))
    valid = row < n_rows
    nll = jnp.where(valid, msk_ref[...] * (lse - tgt_logit), 0.0)

    # Single (tm, 2) per-row output: lane 0 = tag (exact as float), lane 1 = nll.
    two = jax.lax.broadcasted_iota(jnp.int32, (tm, 2), 1)
    row_ref[...] = jnp.where(two == 0, tags.astype(jnp.float32), nll)


# ---------------------------------------------------------------------------
# Row-tile selection from a VMEM budget.
# ---------------------------------------------------------------------------
def _pick_row_tile(n_rows, d_in, cp, x_bytes):
    def vmem_bytes(tm):
        return (2 * tm * d_in * x_bytes      # x tile, double-buffered
                + 2 * tm * cp * 2            # bf16 logits out, double-buffered
                + 2 * tm * 2 * 4             # (tag, nll) row output
                + 2 * tm * 4 * 2             # targets + mask
                + 2 * d_in * cp * 2          # resident bf16 weight (2 buffers)
                + 2 * cp * 4                 # bias
                + tm * cp * 4)               # f32 logits intermediate

    if vmem_bytes(8) > _VMEM_BUDGET:
        # TODO(synk): class-tiled variant (an 'arbitrary' Cp grid axis with
        # online max/LSE accumulation in VMEM scratch) for very large D * C.
        raise NotImplementedError(
            "projection weight too large for a single resident VMEM tile")

    tm = 8
    for cand in (1024, 512, 256, 128, 64, 32, 16, 8):
        if vmem_bytes(cand) <= _VMEM_BUDGET:
            tm = cand
            break
    # v7x has 2 TensorCores: keep the 'parallel' row grid at >= 2 steps.
    while tm > 8 and pl.cdiv(n_rows, tm) < 2:
        tm //= 2
    return tm


# ---------------------------------------------------------------------------
# Parameter preparation (hoisted off the per-call path).
# ---------------------------------------------------------------------------
def prepare_projection(w, b):
    """Pad the class dim to a lane-dense multiple of 128 and cast the weight
    to bf16.  Call once, reuse across forward calls.

    w: (D, C) projection weight (pre-transposed vs. nn.Linear's (C, D)).
    b: (C,)   projection bias.
    """
    d_in, c = w.shape
    cp = _round_up(max(c, _LANE), _LANE)
    w_bf = jnp.pad(w.astype(jnp.bfloat16), ((0, 0), (0, cp - c)))
    b_p = jnp.pad(b.astype(jnp.float32), (0, cp - c)).reshape(1, cp)
    return w_bf, b_p


# ---------------------------------------------------------------------------
# Wrapper: InferenceLayer.forward equivalent (fc path).
# ---------------------------------------------------------------------------
def inference_layer_forward(vectors, mask, targets, w_bf, b_p, *,
                            n_classes, use_crf=False):
    """vectors: (B, T, D) float, mask: (B, T) {0,1} or None, targets: (B, T) int.
    w_bf, b_p: outputs of prepare_projection().
    Returns dict(loss, logits (B,T,C) f32, tags (B,T) argmax, mask).
    """
    if use_crf:
        # TODO(synk): CRF forward/viterbi path not implemented.
        raise NotImplementedError("use_crf=True path not implemented")

    B, T, D = vectors.shape
    Dw, Cp = w_bf.shape
    assert Dw == D and Cp % _LANE == 0 and n_classes <= Cp
    M = B * T

    # Free reshapes only — no extra HBM passes over the activations.
    x = vectors.reshape(M, D)
    tgt = targets.reshape(M, 1).astype(jnp.int32)
    if mask is None:
        msk = jnp.ones((M, 1), jnp.float32)
    else:
        msk = mask.reshape(M, 1).astype(jnp.float32)

    tm = _pick_row_tile(M, D, Cp, x.dtype.itemsize)
    kernel = functools.partial(_inference_kernel, n_rows=M, n_classes=n_classes)

    logits_p, row_p = pl.pallas_call(
        kernel,
        out_shape=(
            jax.ShapeDtypeStruct((M, Cp), jnp.bfloat16),   # lane-dense logits
            jax.ShapeDtypeStruct((M, 2), jnp.float32),     # (tag, nll) per row
        ),
        grid_spec=pltpu.PrefetchScalarGridSpec(
            num_scalar_prefetch=0,
            grid=(pl.cdiv(M, tm),),
            in_specs=[
                pl.BlockSpec((tm, D), lambda i: (i, 0)),   # activations (f32)
                pl.BlockSpec((D, Cp), lambda i: (0, 0)),   # weight (resident)
                pl.BlockSpec((1, Cp), lambda i: (0, 0)),   # bias   (resident)
                pl.BlockSpec((tm, 1), lambda i: (i, 0)),   # targets
                pl.BlockSpec((tm, 1), lambda i: (i, 0)),   # mask
            ],
            out_specs=(
                pl.BlockSpec((tm, Cp), lambda i: (i, 0)),
                pl.BlockSpec((tm, 2), lambda i: (i, 0)),
            ),
        ),
        compiler_params=pltpu.CompilerParams(
            dimension_semantics=("parallel",),   # rows independent (2 TCs on v7x)
            vmem_limit_bytes=_VMEM_LIMIT,
        ),
    )(x, w_bf, b_p, tgt, msk)

    logits = logits_p[:, :n_classes].astype(jnp.float32).reshape(B, T, n_classes)
    tags = row_p[:, 0].astype(jnp.int32).reshape(B, T)
    denom = jnp.maximum(jnp.sum(msk), 1.0)
    loss = jnp.sum(row_p[:, 1]) / denom          # mean CE over masked positions
    return {"loss": loss, "logits": logits, "tags": tags, "mask": mask}


def tags_to_lists(tags, mask):
    """Host-side equivalent of the PyTorch .cpu().tolist() + length truncation."""
    tags = jax.device_get(tags)
    if mask is None:
        return [[int(t) for t in row] for row in tags]
    lens = jax.device_get(jnp.sum(mask.astype(jnp.int32), axis=-1))
    return [[int(t) for t in row[:int(l)]] for row, l in zip(tags, lens)]


if __name__ == "__main__":
    # Small deterministic test shapes.
    B, T, D, C = 2, 8, 16, 5

    key = jax.random.PRNGKey(0)
    k_x, k_t, k_w, k_b = jax.random.split(key, 4)

    vectors = jax.random.normal(k_x, (B, T, D), jnp.float32)
    targets = jax.random.randint(k_t, (B, T), 0, C, jnp.int32)
    lengths = jnp.array([8, 5], dtype=jnp.int32)
    mask = (jnp.arange(T)[None, :] < lengths[:, None]).astype(jnp.float32)

    bound = 1.0 / jnp.sqrt(D)
    w = jax.random.uniform(k_w, (D, C), jnp.float32, -bound, bound)
    b = jax.random.uniform(k_b, (C,), jnp.float32, -bound, bound)

    # Hoisted once: padded, bf16 projection parameters reused per call.
    w_bf, b_p = prepare_projection(w, b)

    fwd = jax.jit(functools.partial(inference_layer_forward,
                                    n_classes=C, use_crf=False))
    out = fwd(vectors, mask, targets, w_bf, b_p)
    jax.block_until_ready(out)

    # Plain-JAX f32 reference (loose tol: bf16 MXU operands + bf16 logits out).
    ref_logits = vectors @ w + b
    m = mask.reshape(-1)
    ref_logp = jax.nn.log_softmax(ref_logits.reshape(-1, C), axis=-1)
    ref_nll = -jnp.take_along_axis(ref_logp, targets.reshape(-1, 1), axis=-1)[:, 0]
    ref_loss = jnp.sum(ref_nll * m) / jnp.sum(m)

    assert out["logits"].shape == (B, T, C)
    assert out["tags"].shape == (B, T)
    assert jnp.allclose(out["logits"], ref_logits, atol=5e-2), "logits mismatch"
    assert jnp.allclose(out["loss"], ref_loss, atol=5e-2), "loss mismatch"
    # NOTE: tags may differ from the f32 reference only for near-tied classes
    # (bf16 MXU rounding); loss/logits tolerances cover the numerics.

    _ = tags_to_lists(out["tags"], mask)   # ragged per-sequence tag lists (host)
    print("KERNEL_OK")
</pallas_src>

<mosaic_0001>
module attributes {stable_mosaic.version = 11 : i64} {
  func.func @_inference_kernel(%arg0: i32, %arg1: memref<8x16xf32, #tpu.memory_space<vmem>>, %arg2: memref<16x128xbf16, #tpu.memory_space<vmem>>, %arg3: memref<1x128xf32, #tpu.memory_space<vmem>>, %arg4: memref<8x1xi32, #tpu.memory_space<vmem>>, %arg5: memref<8x1xf32, #tpu.memory_space<vmem>>, %arg6: memref<8x128xbf16, #tpu.memory_space<vmem>>, %arg7: memref<8x2xf32, #tpu.memory_space<vmem>>) attributes {dimension_semantics = [#tpu.dimension_semantics<parallel>], iteration_bounds = array<i64: 2>, scalar_prefetch = 0 : i64, scratch_operands = 0 : i64, tpu.core_type = #tpu.core_type<tc>, window_params = [{transform_indices = @transform_0, window_bounds = array<i64: 8, 16>}, {pipeline_mode = #tpu.pipeline_mode<synchronous>, transform_indices = @transform_1, window_bounds = array<i64: 16, 128>}, {pipeline_mode = #tpu.pipeline_mode<synchronous>, transform_indices = @transform_2, window_bounds = array<i64: 1, 128>}, {transform_indices = @transform_3, window_bounds = array<i64: 8, 1>}, {transform_indices = @transform_4, window_bounds = array<i64: 8, 1>}, {transform_indices = @transform_5, window_bounds = array<i64: 8, 128>}, {transform_indices = @transform_6, window_bounds = array<i64: 8, 2>}]} {
    %c0 = arith.constant 0 : index
    %c0_0 = arith.constant 0 : index
    %0 = vector.load %arg1[%c0, %c0_0] : memref<8x16xf32, #tpu.memory_space<vmem>>, vector<8x16xf32>
    %1 = arith.truncf %0 : vector<8x16xf32> to vector<8x16xbf16>
    %c0_1 = arith.constant 0 : index
    %c0_2 = arith.constant 0 : index
    %2 = vector.load %arg2[%c0_1, %c0_2] : memref<16x128xbf16, #tpu.memory_space<vmem>>, vector<16x128xbf16>
    %cst = arith.constant dense<0.000000e+00> : vector<8x128xf32>
    %3 = tpu.matmul %1, %2, %cst {dimension_numbers = #tpu.dot_dimension_numbers<[1], [0], [0], [1], [0, 0, 1, 1], [], []>} : vector<8x16xbf16>, vector<16x128xbf16>, vector<8x128xf32> -> vector<8x128xf32>
    %c0_3 = arith.constant 0 : index
    %c0_4 = arith.constant 0 : index
    %4 = vector.load %arg3[%c0_3, %c0_4] : memref<1x128xf32, #tpu.memory_space<vmem>>, vector<1x128xf32>
    %5 = vector.broadcast %4 : vector<1x128xf32> to vector<8x128xf32>
    %6 = arith.addf %3, %5 : vector<8x128xf32>
    %7 = arith.truncf %6 : vector<8x128xf32> to vector<8x128xbf16>
    %c0_5 = arith.constant 0 : index
    %c0_6 = arith.constant 0 : index
    %8 = vector.load %arg6[%c0_5, %c0_6] : memref<8x128xbf16, #tpu.memory_space<vmem>>, vector<8x128xbf16>
    tpu.vector_store %arg6[%c0_5, %c0_6], %7 {strides = array<i32>} : memref<8x128xbf16, #tpu.memory_space<vmem>>, vector<8x128xbf16>,
    %9 = tpu.iota {dimensions = array<i32: 1>} : vector<8x128xi32>
    %c5_i32 = arith.constant 5 : i32
    %10 = vector.broadcast %c5_i32 : i32 to vector<8x128xi32>
    %11 = arith.cmpi slt, %9, %10 : vector<8x128xi32>
    %cst_7 = arith.constant -1.000000e+30 : f32
    %12 = vector.broadcast %cst_7 : f32 to vector<8x128xf32>
    %13 = arith.select %11, %6, %12 : vector<8x128xi1>, vector<8x128xf32>
    %cst_8 = arith.constant dense<0xFF800000> : vector<8xf32>
    %14 = vector.multi_reduction <maximumf>, %13, %cst_8 [1] : vector<8x128xf32> to vector<8xf32>
    %15 = vector.shape_cast %14 : vector<8xf32> to vector<8x1xf32>
    %16 = vector.broadcast %15 : vector<8x1xf32> to vector<8x128xf32>
    %17 = arith.cmpf oeq, %13, %16 : vector<8x128xf32>
    %c128_i32 = arith.constant 128 : i32
    %18 = vector.broadcast %c128_i32 : i32 to vector<8x128xi32>
    %19 = arith.select %17, %9, %18 : vector<8x128xi1>, vector<8x128xi32>
    %cst_9 = arith.constant dense<2147483647> : vector<8xi32>
    %20 = vector.multi_reduction <minsi>, %19, %cst_9 [1] : vector<8x128xi32> to vector<8xi32>
    %21 = vector.shape_cast %20 : vector<8xi32> to vector<8x1xi32>
    %22 = vector.broadcast %15 : vector<8x1xf32> to vector<8x128xf32>
    %23 = arith.subf %13, %22 : vector<8x128xf32>
    %24 = math.exp %23 : vector<8x128xf32>
    %cst_10 = arith.constant dense<0.000000e+00> : vector<8xf32>
    %25 = vector.multi_reduction <add>, %24, %cst_10 [1] : vector<8x128xf32> to vector<8xf32>
    %26 = vector.shape_cast %25 : vector<8xf32> to vector<8x1xf32>
    %27 = math.log %26 : vector<8x1xf32>
    %28 = arith.addf %15, %27 : vector<8x1xf32>
    %c0_11 = arith.constant 0 : index
    %c0_12 = arith.constant 0 : index
    %29 = vector.load %arg4[%c0_11, %c0_12] : memref<8x1xi32, #tpu.memory_space<vmem>>, vector<8x1xi32>
    %30 = vector.broadcast %29 : vector<8x1xi32> to vector<8x128xi32>
    %31 = arith.cmpi eq, %9, %30 : vector<8x128xi32>
    %cst_13 = arith.constant 0.000000e+00 : f32
    %32 = vector.broadcast %cst_13 : f32 to vector<8x128xf32>
    %33 = arith.select %31, %6, %32 : vector<8x128xi1>, vector<8x128xf32>
    %cst_14 = arith.constant dense<0.000000e+00> : vector<8xf32>
    %34 = vector.multi_reduction <add>, %33, %cst_14 [1] : vector<8x128xf32> to vector<8xf32>
    %35 = vector.shape_cast %34 : vector<8xf32> to vector<8x1xf32>
    %c8_i32 = arith.constant 8 : i32
    %36 = arith.muli %arg0, %c8_i32 : i32
    %37 = tpu.iota {dimensions = array<i32: 0>} : vector<8x1xi32>
    %38 = vector.broadcast %36 : i32 to vector<8x1xi32>
    %39 = arith.addi %38, %37 : vector<8x1xi32>
    %c16_i32 = arith.constant 16 : i32
    %40 = vector.broadcast %c16_i32 : i32 to vector<8x1xi32>
    %41 = arith.cmpi slt, %39, %40 : vector<8x1xi32>
    %c0_15 = arith.constant 0 : index
    %c0_16 = arith.constant 0 : index
    %42 = vector.load %arg5[%c0_15, %c0_16] : memref<8x1xf32, #tpu.memory_space<vmem>>, vector<8x1xf32>
    %43 = arith.subf %28, %35 : vector<8x1xf32>
    %44 = arith.mulf %42, %43 : vector<8x1xf32>
    %cst_17 = arith.constant 0.000000e+00 : f32
    %45 = vector.broadcast %cst_17 : f32 to vector<8x1xf32>
    %46 = arith.select %41, %44, %45 : vector<8x1xi1>, vector<8x1xf32>
    %47 = tpu.iota {dimensions = array<i32: 1>} : vector<8x2xi32>
    %c0_i32 = arith.constant 0 : i32
    %48 = vector.broadcast %c0_i32 : i32 to vector<8x2xi32>
    %49 = arith.cmpi eq, %47, %48 : vector<8x2xi32>
    %50 = arith.sitofp %21 : vector<8x1xi32> to vector<8x1xf32>
    %51 = vector.shape_cast %50 : vector<8x1xf32> to vector<8x1xf32>
    %52 = vector.broadcast %51 : vector<8x1xf32> to vector<8x2xf32>
    %53 = vector.shape_cast %46 : vector<8x1xf32> to vector<8x1xf32>
    %54 = vector.broadcast %53 : vector<8x1xf32> to vector<8x2xf32>
    %55 = arith.select %49, %52, %54 : vector<8x2xi1>, vector<8x2xf32>
    %c0_18 = arith.constant 0 : index
    %c0_19 = arith.constant 0 : index
    %56 = vector.load %arg7[%c0_18, %c0_19] : memref<8x2xf32, #tpu.memory_space<vmem>>, vector<8x2xf32>
    tpu.vector_store %arg7[%c0_18, %c0_19], %55 {strides = array<i32>} : memref<8x2xf32, #tpu.memory_space<vmem>>, vector<8x2xf32>,
    return
  }
  func.func @transform_0(%arg0: i32) -> (i32, i32) {
    %c0_i32 = arith.constant 0 : i32
    %c0_i32_0 = arith.constant 0 : i32
    return %arg0, %c0_i32 : i32, i32
  }
  func.func @transform_1(%arg0: i32) -> (i32, i32) {
    %c0_i32 = arith.constant 0 : i32
    %c0_i32_0 = arith.constant 0 : i32
    %c0_i32_1 = arith.constant 0 : i32
    return %c0_i32, %c0_i32_0 : i32, i32
  }
  func.func @transform_2(%arg0: i32) -> (i32, i32) {
    %c0_i32 = arith.constant 0 : i32
    %c0_i32_0 = arith.constant 0 : i32
    %c0_i32_1 = arith.constant 0 : i32
    return %c0_i32, %c0_i32_0 : i32, i32
  }
  func.func @transform_3(%arg0: i32) -> (i32, i32) {
    %c0_i32 = arith.constant 0 : i32
    %c0_i32_0 = arith.constant 0 : i32
    return %arg0, %c0_i32 : i32, i32
  }
  func.func @transform_4(%arg0: i32) -> (i32, i32) {
    %c0_i32 = arith.constant 0 : i32
    %c0_i32_0 = arith.constant 0 : i32
    return %arg0, %c0_i32 : i32, i32
  }
  func.func @transform_5(%arg0: i32) -> (i32, i32) {
    %c0_i32 = arith.constant 0 : i32
    %c0_i32_0 = arith.constant 0 : i32
    return %arg0, %c0_i32 : i32, i32
  }
  func.func @transform_6(%arg0: i32) -> (i32, i32) {
    %c0_i32 = arith.constant 0 : i32
    %c0_i32_0 = arith.constant 0 : i32
    return %arg0, %c0_i32 : i32, i32
  }
}

</mosaic_0001>

<llo_original>
// kernel: inference_layer_forward.1
$region0: #{inference_layer_forward.1}
  #allocation0 [shape = 'u32[]', space=smem, size = 0x4, offset = 0x4, fixed_abs, tag = 'smem constant byte address 0x4 - core index']
  #allocation1 [shape = 'u32[72,128]{1,0:T(1,128)}', space=vmem, size = 0x9000, scoped, tag = 'internal scratch']
  %s0 = inlined_call_operand.vmem [shape: f32[16,16], index: 0, kind: input, shape index: {}]
  %s1 = inlined_call_operand.vmem [shape: bf16[16,128], index: 1, kind: input, shape index: {}]
  %s2 = inlined_call_operand.vmem [shape: f32[1,128], index: 2, kind: input, shape index: {}]
  %s3 = inlined_call_operand.vmem [shape: s32[16,1], index: 3, kind: input, shape index: {}]
  %s4 = inlined_call_operand.vmem [shape: f32[16,1], index: 4, kind: input, shape index: {}]
  %s5 = inlined_call_operand.vmem [shape: bf16[16,128], index: 5, kind: output, shape index: {0}]
  %s6 = inlined_call_operand.vmem [shape: f32[16,2], index: 6, kind: output, shape index: {1}]
  %7 = xla_tuple %s5, %s6
  %s8 = sld [smem:[#allocation0]]
  $region61: #{inference_layer_forward.1} parent=0
    _
  %s10 = ssub.s32 1, %s8
  %s11 = scalar_select 0, %s10, %s8
  loop: start=0, step=1, limit=4
  $region2: #{inference_layer_forward.1} parent=0 // loop_pre_header
    _
  $region3: #{inference_layer_forward.1} parent=0 // loop_header
    %s13 = sphi 0, %s17
    %p14 = scmp.ge.s32.totalorder %s13, 4
    %s23 = sphi 0, %s25
    %s26 = sphi 0, %s23
    %s27 = sphi 0, %s26
    %s43 = sphi 0, %s27
    %s47 = sphi 0, %s47
    %s49 = sphi 0, %s47
    %s50 = sphi 0, %s49
    %s64 = sphi 0, %s50
    %s68 = sphi 0, %s68
    %s70 = sphi 0, %s68
    %s71 = sphi 0, %s70
    %s85 = sphi 0, %s71
    %s91 = sphi 0, %s93
    %s94 = sphi 0, %s91
    %s95 = sphi 0, %s94
    %s111 = sphi 0, %s95
    %s117 = sphi 0, %s119
    %s120 = sphi 0, %s117
    %s121 = sphi 0, %s120
    %s137 = sphi 0, %s121
    %s143 = sphi 0, %s145
    %s146 = sphi 0, %s143
    %s147 = sphi 0, %s146
    %s163 = sphi 0, %s147
    %s169 = sphi 0, %s171
    %s172 = sphi 0, %s169
    %s173 = sphi 0, %s172
    %s189 = sphi 0, %s173
  $region4: #{inference_layer_forward.1} parent=0 // loop_header_branch
    %16 = sbr.rel (%p14) target = $region8
  $region5: #{inference_layer_forward.1} parent=0 // loop_body
    %s18 = ssub.s32 %s13, 1
    %s19 = ssub.s32 %s13, 2
    %s20 = sadd.s32 %s13, 1
    %s21 = ssub.s32 %s13, %s20
    %p22 = scmp.eq.s32.totalorder %s21, 0
    %s24 = sadd.s32 %s23, 1
    %s25 = scalar_select %p22, %s23, %s24
    %p28 = pneg %p22
    %p29 = scmp.eq.s32.totalorder %s13, 1
    %p30 = por %p28, %p29
    %p31 = scmp.ne.s32.totalorder %s23, %s26
    %p32 = scmp.eq.s32.totalorder %s13, 0
    %p33 = por %p31, %p32
    %p34 = scmp.ne.s32.totalorder %s23, %s26
    %p35 = scmp.eq.s32.totalorder %s18, 1
    %p36 = por %p34, %p35
    %p37 = scmp.ne.s32.totalorder %s26, %s27
    %p38 = scmp.eq.s32.totalorder %s18, 0
    %p39 = por %p37, %p38
    %p40 = scmp.ne.s32.totalorder %s26, %s27
    %p41 = scmp.eq.s32.totalorder %s19, 1
    %p42 = por %p40, %p41
    %p44 = scmp.ne.s32.totalorder %s27, %s43
    %p45 = scmp.eq.s32.totalorder %s19, 0
    %p46 = por %p44, %p45
    %s48 = sadd.s32 %s47, 1
    %p51 = scmp.eq.s32.totalorder %s13, 1
    %p52 = scmp.ne.s32.totalorder %s47, %s49
    %p53 = scmp.eq.s32.totalorder %s13, 0
    %p54 = por %p52, %p53
    %p55 = scmp.ne.s32.totalorder %s47, %s49
    %p56 = scmp.eq.s32.totalorder %s18, 1
    %p57 = por %p55, %p56
    %p58 = scmp.ne.s32.totalorder %s49, %s50
    %p59 = scmp.eq.s32.totalorder %s18, 0
    %p60 = por %p58, %p59
    %p61 = scmp.ne.s32.totalorder %s49, %s50
    %p62 = scmp.eq.s32.totalorder %s19, 1
    %p63 = por %p61, %p62
    %p65 = scmp.ne.s32.totalorder %s50, %s64
    %p66 = scmp.eq.s32.totalorder %s19, 0
    %p67 = por %p65, %p66
    %s69 = sadd.s32 %s68, 1
    %p72 = scmp.eq.s32.totalorder %s13, 1
    %p73 = scmp.ne.s32.totalorder %s68, %s70
    %p74 = scmp.eq.s32.totalorder %s13, 0
    %p75 = por %p73, %p74
    %p76 = scmp.ne.s32.totalorder %s68, %s70
    %p77 = scmp.eq.s32.totalorder %s18, 1
    %p78 = por %p76, %p77
    %p79 = scmp.ne.s32.totalorder %s70, %s71
    %p80 = scmp.eq.s32.totalorder %s18, 0
    %p81 = por %p79, %p80
    %p82 = scmp.ne.s32.totalorder %s70, %s71
    %p83 = scmp.eq.s32.totalorder %s19, 1
    %p84 = por %p82, %p83
    %p86 = scmp.ne.s32.totalorder %s71, %s85
    %p87 = scmp.eq.s32.totalorder %s19, 0
    %p88 = por %p86, %p87
    %s89 = ssub.s32 %s13, %s20
    %p90 = scmp.eq.s32.totalorder %s89, 0
    %s92 = sadd.s32 %s91, 1
    %s93 = scalar_select %p90, %s91, %s92
    %p96 = pneg %p90
    %p97 = scmp.eq.s32.totalorder %s13, 1
    %p98 = por %p96, %p97
    %p99 = scmp.ne.s32.totalorder %s91, %s94
    %p100 = scmp.eq.s32.totalorder %s13, 0
    %p101 = por %p99, %p100
    %p102 = scmp.ne.s32.totalorder %s91, %s94
    %p103 = scmp.eq.s32.totalorder %s18, 1
    %p104 = por %p102, %p103
    %p105 = scmp.ne.s32.totalorder %s94, %s95
    %p106 = scmp.eq.s32.totalorder %s18, 0
    %p107 = por %p105, %p106
    %p108 = scmp.ne.s32.totalorder %s94, %s95
    %p109 = scmp.eq.s32.totalorder %s19, 1
    %p110 = por %p108, %p109
    %p112 = scmp.ne.s32.totalorder %s95, %s111
    %p113 = scmp.eq.s32.totalorder %s19, 0
    %p114 = por %p112, %p113
    %s115 = ssub.s32 %s13, %s20
    %p116 = scmp.eq.s32.totalorder %s115, 0
    %s118 = sadd.s32 %s117, 1
    %s119 = scalar_select %p116, %s117, %s118
    %p122 = pneg %p116
    %p123 = scmp.eq.s32.totalorder %s13, 1
    %p124 = por %p122, %p123
    %p125 = scmp.ne.s32.totalorder %s117, %s120
    %p126 = scmp.eq.s32.totalorder %s13, 0
    %p127 = por %p125, %p126
    %p128 = scmp.ne.s32.totalorder %s117, %s120
    %p129 = scmp.eq.s32.totalorder %s18, 1
    %p130 = por %p128, %p129
    %p131 = scmp.ne.s32.totalorder %s120, %s121
    %p132 = scmp.eq.s32.totalorder %s18, 0
    %p133 = por %p131, %p132
    %p134 = scmp.ne.s32.totalorder %s120, %s121
    %p135 = scmp.eq.s32.totalorder %s19, 1
    %p136 = por %p134, %p135
    %p138 = scmp.ne.s32.totalorder %s121, %s137
    %p139 = scmp.eq.s32.totalorder %s19, 0
    %p140 = por %p138, %p139
    %s141 = ssub.s32 %s13, %s20
    %p142 = scmp.eq.s32.totalorder %s141, 0
    %s144 = sadd.s32 %s143, 1
    %s145 = scalar_select %p142, %s143, %s144
    %p148 = pneg %p142
    %p149 = scmp.eq.s32.totalorder %s13, 1
    %p150 = por %p148, %p149
    %p151 = scmp.ne.s32.totalorder %s143, %s146
    %p152 = scmp.eq.s32.totalorder %s13, 0
    %p153 = por %p151, %p152
    %p154 = scmp.ne.s32.totalorder %s143, %s146
    %p155 = scmp.eq.s32.totalorder %s18, 1
    %p156 = por %p154, %p155
    %p157 = scmp.ne.s32.totalorder %s146, %s147
    %p158 = scmp.eq.s32.totalorder %s18, 0
    %p159 = por %p157, %p158
    %p160 = scmp.ne.s32.totalorder %s146, %s147
    %p161 = scmp.eq.s32.totalorder %s19, 1
    %p162 = por %p160, %p161
    %p164 = scmp.ne.s32.totalorder %s147, %s163
    %p165 = scmp.eq.s32.totalorder %s19, 0
    %p166 = por %p164, %p165
    %s167 = ssub.s32 %s13, %s20
    %p168 = scmp.eq.s32.totalorder %s167, 0
    %s170 = sadd.s32 %s169, 1
    %s171 = scalar_select %p168, %s169, %s170
    %p174 = pneg %p168
    %p175 = scmp.eq.s32.totalorder %s13, 1
    %p176 = por %p174, %p175
    %p177 = scmp.ne.s32.totalorder %s169, %s172
    %p178 = scmp.eq.s32.totalorder %s13, 0
    %p179 = por %p177, %p178
    %p180 = scmp.ne.s32.totalorder %s169, %s172
    %p181 = scmp.eq.s32.totalorder %s18, 1
    %p182 = por %p180, %p181
    %p183 = scmp.ne.s32.totalorder %s172, %s173
    %p184 = scmp.eq.s32.totalorder %s18, 0
    %p185 = por %p183, %p184
    %p186 = scmp.ne.s32.totalorder %s172, %s173
    %p187 = scmp.eq.s32.totalorder %s19, 1
    %p188 = por %p186, %p187
    %p190 = scmp.ne.s32.totalorder %s173, %s189
    %p191 = scmp.eq.s32.totalorder %s19, 0
    %p192 = por %p190, %p191
    %p193 = scmp.le.s32.totalorder 1, %s13
    %p194 = scmp.lt.s32.totalorder %s13, 3
    %p195 = pnand %p193, %p194
    %p196 = pneg %p195
    // Predicated region
    $region9: #{inference_layer_forward.1} parent=5 // pred_check
      _
    $region10: #{inference_layer_forward.1} parent=5 // pred_check_branch
      %198 = sbr.rel (%p195) target = $region12
    $region11: #{inference_layer_forward.1} parent=5 // pred_region
      %s199 = ssub.s32 %s13, 1
      // Predicated region
      $region13: #{inference_layer_forward.1} parent=11 // pred_check
        %p200 = pneg %p60
      $region14: #{inference_layer_forward.1} parent=11 // pred_check_branch
        %202 = sbr.rel (%p200) target = $region16
      $region15: #{inference_layer_forward.1} parent=11 // pred_region
        _
      $region16: #{inference_layer_forward.1} parent=11 // pred_fallthru
        _
      // Predicated region
      $region17: #{inference_layer_forward.1} parent=11 // pred_check
        %p203 = pneg %p81
      $region18: #{inference_layer_forward.1} parent=11 // pred_check_branch
        %205 = sbr.rel (%p203) target = $region20
      $region19: #{inference_layer_forward.1} parent=11 // pred_region
        _
      $region20: #{inference_layer_forward.1} parent=11 // pred_fallthru
        _
    $region12: #{inference_layer_forward.1} parent=5 // pred_fallthru
      _
    %p206 = scmp.lt.s32.totalorder %s13, 2
    // Predicated region
    $region21: #{inference_layer_forward.1} parent=5 // pred_check
      %p207 = pneg %p206
    $region22: #{inference_layer_forward.1} parent=5 // pred_check_branch
      %209 = sbr.rel (%p207) target = $region24
    $region23: #{inference_layer_forward.1} parent=5 // pred_region
      // Predicated region
      $region25: #{inference_layer_forward.1} parent=23 // pred_check
        %p210 = pneg %p33
      $region26: #{inference_layer_forward.1} parent=23 // pred_check_branch
        %212 = sbr.rel (%p210) target = $region28
      $region27: #{inference_layer_forward.1} parent=23 // pred_region
        %p213 = scmp.lt.s32.totalorder %s13, 1
        %s214 = scalar_select %p213, %s13, 1
        %s215 = smul.addr %s214, 8
        %s216 = scalar_lea.vmem %s0, %s215
      $region28: #{inference_layer_forward.1} parent=23 // pred_fallthru
        _
      // Predicated region
      $region29: #{inference_layer_forward.1} parent=23 // pred_check
        %p217 = pneg %p101
      $region30: #{inference_layer_forward.1} parent=23 // pred_check_branch
        %219 = sbr.rel (%p217) target = $region32
      $region31: #{inference_layer_forward.1} parent=23 // pred_region
        %p220 = scmp.lt.s32.totalorder %s13, 1
        %s221 = scalar_select %p220, %s13, 1
        %s222 = smul.addr %s221, 8
        %s223 = scalar_lea.vmem %s3, %s222
      $region32: #{inference_layer_forward.1} parent=23 // pred_fallthru
        _
      // Predicated region
      $region33: #{inference_layer_forward.1} parent=23 // pred_check
        %p224 = pneg %p127
      $region34: #{inference_layer_forward.1} parent=23 // pred_check_branch
        %226 = sbr.rel (%p224) target = $region36
      $region35: #{inference_layer_forward.1} parent=23 // pred_region
        %p227 = scmp.lt.s32.totalorder %s13, 1
        %s228 = scalar_select %p227, %s13, 1
        %s229 = smul.addr %s228, 8
        %s230 = scalar_lea.vmem %s4, %s229
      $region36: #{inference_layer_forward.1} parent=23 // pred_fallthru
        _
    $region24: #{inference_layer_forward.1} parent=5 // pred_fallthru
      _
    %p231 = scmp.le.s32.totalorder 1, %s13
    %p232 = scmp.lt.s32.totalorder %s13, 3
    %p233 = pnand %p231, %p232
    %p234 = pneg %p233
    // Predicated region
    $region37: #{inference_layer_forward.1} parent=5 // pred_check
      _
    $region38: #{inference_layer_forward.1} parent=5 // pred_check_branch
      %236 = sbr.rel (%p233) target = $region40
    $region39: #{inference_layer_forward.1} parent=5 // pred_region
      %s237 = ssub.s32 %s13, 1
      %p238 = scmp.lt.s32.totalorder %s18, 1
      %s239 = scalar_select %p238, %s18, 1
      %s240 = smul.addr %s239, 8
      %s241 = scalar_lea.vmem %s0, %s240
      %p242 = pneg %p39
      %p243 = pneg %p36
      %p244 = pneg %p60
      %p245 = pneg %p57
      %p246 = pneg %p81
      %p247 = pneg %p78
      %p248 = scmp.lt.s32.totalorder %s18, 1
      %s249 = scalar_select %p248, %s18, 1
      %s250 = smul.addr %s249, 8
      %s251 = scalar_lea.vmem %s3, %s250
      %p252 = pneg %p107
      %p253 = pneg %p104
      %p254 = scmp.lt.s32.totalorder %s18, 1
      %s255 = scalar_select %p254, %s18, 1
      %s256 = smul.addr %s255, 8
      %s257 = scalar_lea.vmem %s4, %s256
      %p258 = pneg %p133
      %p259 = pneg %p130
      %p260 = pneg %p159
      %p261 = pneg %p156
      %p262 = scmp.lt.s32.totalorder %s18, 1
      %s263 = scalar_select %p262, %s18, 1
      %s264 = smul.addr %s263, 4
      %s265 = scalar_lea.vmem %s5, %s264
      %p266 = pneg %p185
      %p267 = pneg %p182
      %p268 = scmp.lt.s32.totalorder %s18, 1
      %s269 = scalar_select %p268, %s18, 1
      %s270 = smul.addr %s269, 8
      %s271 = scalar_lea.vmem %s6, %s270
      %p272 = scmp.lt.s32.totalorder %s18, 1
      %s273 = scalar_select %p272, %s18, 1
      %s274 = smul.addr %s273, 8
      %s275 = scalar_lea.vmem %s0, %s274
      %p276 = scmp.lt.s32.totalorder %s18, 1
      %s277 = scalar_select %p276, %s18, 1
      %s278 = smul.addr %s277, 8
      %s279 = scalar_lea.vmem %s3, %s278
      %p280 = scmp.lt.s32.totalorder %s18, 1
      %s281 = scalar_select %p280, %s18, 1
      %s282 = smul.addr %s281, 8
      %s283 = scalar_lea.vmem %s4, %s282
      %p284 = scmp.lt.s32.totalorder %s18, 1
      %s285 = scalar_select %p284, %s18, 1
      %s286 = smul.addr %s285, 4
      %s287 = scalar_lea.vmem %s5, %s286
      %p288 = scmp.lt.s32.totalorder %s18, 1
      %s289 = scalar_select %p288, %s18, 1
      %s290 = smul.addr %s289, 8
      %s291 = scalar_lea.vmem %s6, %s290
      %v293 = vld [vmem:[%s275] sm:$0xff]
      %v294 = vpack.c.bf16 %v293, %v293
      %v295 = vld [vmem:[%s1] sm:$0xf]
      %v296 = vld [vmem:[%s1 + $0x4] sm:$0xf]
      %v297 = vld [vmem:[%s2] sm:$0x1]
      %v299 = vperm.slane %v297, 0
      %v303 = vunpack.c.l.b16 %v295
      %v304 = vunpack.c.l.b16 %v296
      %v305 = vpack.c.b16 %v304, %v303
      %vm307 = vcmask 130048
      %v309 = vsel %vm307, %v294, 0
      %311 = vmatpush.bf16.msra.mxu0 0
      %312 = vmatpush.bf16.msra.mxu0 0
      %313 = vmatpush.bf16.msra.mxu0 0
      %314 = vmatpush.bf16.msra.mxu0 0
      %315 = vmatpush.bf16.msra.mxu0 0
      %316 = vmatpush.bf16.msra.mxu0 0
      %317 = vmatpush.bf16.msra.mxu0 0
      %318 = vmatpush.bf16.msra.mxu0 %v305
      %319 = vmatmul.bf16.gmra.mxu0 %v309
      %v320 = vpop.f32.mrf.mxu0
      %v321 = vadd.f32 %v299, %v320
      %v322 = vpop.f32.mrf.mxu0
      %323 = vdwg.mxu0
      %v324 = vpack.c.bf16 %v321, %v321
      %325 = vst [vmem:[%s287] sm:$0xf] %v324
      %v326 = vlaneseq
      %v327 = vand.u32 %v326, 127
      %vm328 = vcmp.lt.s32.totalorder %v327, 5
      %v329 = vsel %vm328, %v321, -1e+30
      %330 = vmax.xlane.f32.xlu0 %v329
      %v331 = vpop.xlane.xlu0 %330
      %vm332 = vcmp.eq.f32.partialorder %v329, %v331
      %v333 = vsel %vm332, %v327, 128
      %v334 = vand.u32 %v333, 65535
      %v335 = vshra.s32 %v333, 16
      %v336 = vcvt.s32.f32 %v334
      %v337 = vcvt.s32.f32 %v335
      %338 = vmin.xlane.f32.xlu0 %v337
      %v339 = vpop.xlane.xlu0 %338
      %vm340 = vcmp.eq.f32.partialorder %v337, %v339
      %v341 = vsel %vm340, %v336, inf
      %342 = vmin.xlane.f32.xlu0 %v341
      %v343 = vpop.xlane.xlu0 %342
      %v344 = vcvt.f32.s32 %v343
      %v345 = vcvt.f32.s32 %v339
      %v346 = vshll.u32 %v345, 16
      %v347 = vadd.s32 %v346, %v344
      %v348 = vsub.f32 %v329, %v331
      %v349 = vmul.f32 %v348, 1.442695
      %v350 = vpow.pop %v349
      %351 = vadd.xlane.f32.xlu0 %v350
      %v352 = vpop.xlane.xlu0 %351
      %v353 = vlog2.pop %v352
      %v354 = vmul.f32 %v353, 0.6931472
      %v355 = vadd.f32 %v331, %v354
      %v356 = vld [vmem:[%s279] sm:$0xff]
      %357 = vset.pattern.permute.xlu0 0
      %358 = vperm.xlu0 %357, %v356
      %v359 = vpop.permute.xlu0 %358
      %vm360 = vcmp.eq.s32.totalorder %v327, %v359
      %v361 = vsel %vm360, %v321, 0.0
      %362 = vadd.xlane.f32.xlu0 %v361
      %v363 = vpop.xlane.xlu0 %362
      %s364 = smul.u32 %s18, 8
      %v365 = vlaneseq
      %v366 = vshrl.u32 %v365, 7
      %v367 = vstv %s364
      %v368 = vadd.s32 %v367, %v366
      %vm369 = vcmp.lt.s32.totalorder %v368, 16
      %v370 = vld [vmem:[%s283] sm:$0xff]
      %v371 = vsub.f32 %v355, %v363
      %v372 = vmul.f32 %v370, %v371
      %v373 = vsel %vm369, %v372, 0.0
      %vm374 = vcmp.eq.s32.totalorder %v327, 0
      %v375 = vcvt.s32.f32 %v347
      %377 = vset.pattern.permute.xlu0 0
      %378 = vperm.xlu0 %377, %v373
      %v379 = vpop.permute.xlu0 %378
      %v381 = vsel %vm374, %v375, %v379
      %vm382 = vcmask 15360
      %383 = vst.msk [vmem:[%s291] sm:$0xff] %vm382, %v381
      %p384 = scmp.lt.s32.totalorder %s18, 1
      %s385 = scalar_select %p384, %s18, 1
      %s386 = smul.addr %s385, 4
      %s387 = scalar_lea.vmem %s5, %s386
      %p388 = scmp.lt.s32.totalorder %s18, 1
      %s389 = scalar_select %p388, %s18, 1
      %s390 = smul.addr %s389, 8
      %s391 = scalar_lea.vmem %s6, %s390
      // Predicated region
      $region41: #{inference_layer_forward.1} parent=39 // pred_check
        %p392 = pneg %p156
      $region42: #{inference_layer_forward.1} parent=39 // pred_check_branch
        %394 = sbr.rel (%p392) target = $region44
      $region43: #{inference_layer_forward.1} parent=39 // pred_region
        _
      $region44: #{inference_layer_forward.1} parent=39 // pred_fallthru
        _
      // Predicated region
      $region45: #{inference_layer_forward.1} parent=39 // pred_check
        %p395 = pneg %p182
      $region46: #{inference_layer_forward.1} parent=39 // pred_check_branch
        %397 = sbr.rel (%p395) target = $region48
      $region47: #{inference_layer_forward.1} parent=39 // pred_region
        _
      $region48: #{inference_layer_forward.1} parent=39 // pred_fallthru
        _
    $region40: #{inference_layer_forward.1} parent=5 // pred_fallthru
      _
    %p398 = scmp.le.s32.totalorder 2, %s13
    // Predicated region
    $region49: #{inference_layer_forward.1} parent=5 // pred_check
      %p399 = pneg %p398
    $region50: #{inference_layer_forward.1} parent=5 // pred_check_branch
      %401 = sbr.rel (%p399) target = $region52
    $region51: #{inference_layer_forward.1} parent=5 // pred_region
      %s402 = ssub.s32 %s13, 2
      // Predicated region
      $region53: #{inference_layer_forward.1} parent=51 // pred_check
        %p403 = pneg %p162
      $region54: #{inference_layer_forward.1} parent=51 // pred_check_branch
        %405 = sbr.rel (%p403) target = $region56
      $region55: #{inference_layer_forward.1} parent=51 // pred_region
        %p406 = scmp.lt.s32.totalorder %s19, 1
        %s407 = scalar_select %p406, %s19, 1
        %s408 = smul.addr %s407, 4
        %s409 = scalar_lea.vmem %s5, %s408
      $region56: #{inference_layer_forward.1} parent=51 // pred_fallthru
        _
      // Predicated region
      $region57: #{inference_layer_forward.1} parent=51 // pred_check
        %p410 = pneg %p188
      $region58: #{inference_layer_forward.1} parent=51 // pred_check_branch
        %412 = sbr.rel (%p410) target = $region60
      $region59: #{inference_layer_forward.1} parent=51 // pred_region
        %p413 = scmp.lt.s32.totalorder %s19, 1
        %s414 = scalar_select %p413, %s19, 1
        %s415 = smul.addr %s414, 8
        %s416 = scalar_lea.vmem %s6, %s415
      $region60: #{inference_layer_forward.1} parent=51 // pred_fallthru
        _
    $region52: #{inference_layer_forward.1} parent=5 // pred_fallthru
      _
  $region6: #{inference_layer_forward.1} parent=0 // loop_footer
    %s17 = sadd.s32 1, %s13
  $region7: #{inference_layer_forward.1} parent=0 // loop_footer_branch
    %12 = sbr.rel target = $region3
  $region8: #{inference_layer_forward.1} parent=0 // loop_exit
    _

</llo_original>
